<compile_context>
chip_gen: v7x
topology: tpu7x:2x2x1
jax: 0.10.0
libtpu: 0.0.40
codegen_flags: <defaults>
</compile_context>

<pallas_src>
import functools
import math

import jax
import jax.numpy as jnp
from jax.experimental import pallas as pl
from jax.experimental.pallas import tpu as pltpu


_SQRT_HALF = 0.7071067811865476


def _gelu_exact(x):
    # torch.nn.GELU default: 0.5 * x * (1 + erf(x / sqrt(2)))
    return 0.5 * x * (1.0 + jax.lax.erf(x * _SQRT_HALF))


def _round_up(v, m):
    return ((v + m - 1) // m) * m


# --------------------------------------------------------------------------- #
# One-time capability probes (module scope, outside any jit)
# --------------------------------------------------------------------------- #
def _detect_buffered1_support():
    """Probe once whether pipeline_mode=pl.Buffered(1) lowers on this build."""
    if not hasattr(pl, "Buffered"):
        return False
    try:
        def _k(x_ref, o_ref):
            o_ref[...] = x_ref[...] + 1.0

        spec = pl.BlockSpec((8, 128), lambda i: (0, 0),
                            pipeline_mode=pl.Buffered(1))
        out = pl.pallas_call(
            _k,
            out_shape=jax.ShapeDtypeStruct((8, 128), jnp.float32),
            grid=(1,),
            in_specs=[spec],
            out_specs=pl.BlockSpec((8, 128), lambda i: (0, 0)),
        )(jnp.zeros((8, 128), jnp.float32))
        jax.block_until_ready(out)
        return True
    except Exception:
        return False


_HAS_BUFFERED1 = _detect_buffered1_support()


def _vmem_budget_bytes():
    # TODO(synk): if get_tpu_info reports per-chip VMEM on v7x (2 TCs/chip),
    # divide by the TensorCore count; we conservatively cap at 128 MiB and
    # take 70% so megacore-sharded grids fit per-core VMEM.
    try:
        info = pltpu.get_tpu_info()
        phys = int(getattr(info, "vmem_capacity_bytes", 64 << 20))
    except Exception:
        phys = 64 << 20
    phys = min(phys, 128 << 20)
    return int(phys * 0.7)


# --------------------------------------------------------------------------- #
# Kernels
# --------------------------------------------------------------------------- #
def _mlp_kernel_fused(x_ref, w1_ref, b1_ref, w2_ref, b2_ref, o_ref, *, slab):
    """Full hidden dim resident; H chunked in-kernel into `slab`-wide slabs."""
    tm = x_ref.shape[0]
    H_p = w1_ref.shape[1]
    Co_p = w2_ref.shape[1]
    n_slabs = H_p // slab

    x = x_ref[...]
    if w1_ref.dtype != jnp.float32 and x.dtype == jnp.float32:
        x = x.astype(w1_ref.dtype)            # bf16-weight deployments only

    def fc(w1s, b1s, w2s, acc):
        h = jnp.dot(x, w1s, preferred_element_type=jnp.float32)
        h = _gelu_exact(h + b1s.astype(jnp.float32))
        if w2_ref.dtype != jnp.float32:
            h = h.astype(w2_ref.dtype)        # cast only right at the fc2 dot
        return acc + jnp.dot(h, w2s, preferred_element_type=jnp.float32)

    acc0 = jnp.zeros((tm, Co_p), jnp.float32)
    if n_slabs == 1:
        acc = fc(w1_ref[...], b1_ref[...], w2_ref[...], acc0)
    else:
        def body(k, acc):
            off = pl.multiple_of(k * slab, slab)
            return fc(w1_ref[:, pl.ds(off, slab)],
                      b1_ref[:, pl.ds(off, slab)],
                      w2_ref[pl.ds(off, slab), :],
                      acc)
        acc = jax.lax.fori_loop(0, n_slabs, body, acc0, unroll=True)

    o_ref[...] = (acc + b2_ref[...].astype(jnp.float32)).astype(o_ref.dtype)


def _mlp_kernel_htiled(x_ref, w1_ref, b1_ref, w2_ref, b2_ref, o_ref, acc_ref):
    """Hidden dim streamed over grid axis k; partial fc2 accumulated in f32."""
    k = pl.program_id(1)

    @pl.when(k == 0)
    def _():
        acc_ref[...] = jnp.zeros_like(acc_ref)

    x = x_ref[...]
    if w1_ref.dtype != jnp.float32 and x.dtype == jnp.float32:
        x = x.astype(w1_ref.dtype)
    h = jnp.dot(x, w1_ref[...], preferred_element_type=jnp.float32)
    h = _gelu_exact(h + b1_ref[...].astype(jnp.float32))
    if w2_ref.dtype != jnp.float32:
        h = h.astype(w2_ref.dtype)
    acc_ref[...] += jnp.dot(h, w2_ref[...], preferred_element_type=jnp.float32)

    @pl.when(k == pl.num_programs(1) - 1)
    def _():
        o_ref[...] = (acc_ref[...] + b2_ref[...].astype(jnp.float32)
                      ).astype(o_ref.dtype)


# --------------------------------------------------------------------------- #
# Parameter preparation (run once at load time)
# --------------------------------------------------------------------------- #
def prepare_mlp_params(w1, b1, w2, b2, *, dtype=None):
    """Pad weights/biases to lane-aligned (128) shapes once, at load time.

    w1: (C_in, H) = fc1.weight.T, b1: (H,), w2: (H, C_out) = fc2.weight.T,
    b2: (C_out,).  Optionally cast to `dtype` (e.g. bf16) for the MXU path.
    Returns (params_tuple, out_features).
    """
    C_in, H = w1.shape
    assert w2.shape[0] == H
    C_out = w2.shape[1]
    Ci_p, H_p, Co_p = (_round_up(d, 128) for d in (C_in, H, C_out))
    if dtype is not None:
        w1, b1, w2, b2 = (a.astype(dtype) for a in (w1, b1, w2, b2))
    w1p = jnp.pad(w1, ((0, Ci_p - C_in), (0, H_p - H)))
    b1p = jnp.pad(b1, (0, H_p - H)).reshape(1, H_p)
    w2p = jnp.pad(w2, ((0, H_p - H), (0, Co_p - C_out)))
    b2p = jnp.pad(b2, (0, Co_p - C_out)).reshape(1, Co_p)
    return (w1p, b1p, w2p, b2p), C_out


# --------------------------------------------------------------------------- #
# Forward (jitted; no host syncs, no per-call weight padding)
# --------------------------------------------------------------------------- #
@functools.partial(jax.jit,
                   static_argnames=("out_features", "tile_m", "tile_h", "slab"))
def mlp_forward(x, params, *, out_features, tile_m=512, tile_h=None, slab=None):
    """x: (B, N, C_in); params from prepare_mlp_params; returns (B, N, C_out)."""
    w1p, b1p, w2p, b2p = params
    B, N, C_in = x.shape
    Ci_p, H_p = w1p.shape
    Co_p = w2p.shape[1]
    M = B * N

    out_dtype = x.dtype
    x_item = jnp.dtype(x.dtype).itemsize
    o_item = jnp.dtype(out_dtype).itemsize
    w_item = jnp.dtype(w1p.dtype).itemsize

    # ---- activations: flatten; feature-pad ONLY if C_in is not lane-aligned
    x2 = x.reshape(M, C_in)
    if Ci_p != C_in:
        x2 = jnp.pad(x2, ((0, 0), (0, Ci_p - C_in)))

    # ---- hidden-dim slab for the in-kernel chunked fused path --------------
    if slab is None:
        if H_p <= 512:
            slab_sel = H_p
        else:
            slab_sel = next(s for s in (512, 256, 128) if H_p % s == 0)
    else:
        slab_sel = min(_round_up(int(slab), 128), H_p)
        if H_p % slab_sel != 0:
            slab_sel = 128

    # ---- row tile: large for MXU occupancy; no row padding (cdiv grid) -----
    tile_m = max(8, (int(tile_m) // 8) * 8)
    tm = M if M <= tile_m else tile_m

    budget = _vmem_budget_bytes()
    wbuf = 1 if _HAS_BUFFERED1 else 2

    def fused_fp(tm_):
        wbytes = wbuf * (Ci_p * H_p + H_p + H_p * Co_p + Co_p) * w_item
        io = 2 * tm_ * (Ci_p * x_item + Co_p * o_item)
        work = tm_ * (slab_sel + Co_p + Ci_p) * 4
        return wbytes + io + work

    def htiled_fp(tm_, th_):
        wbytes = 2 * (Ci_p * th_ + th_ + th_ * Co_p) * w_item + 2 * Co_p * w_item
        io = 2 * tm_ * (Ci_p * x_item + Co_p * o_item)
        work = tm_ * (th_ + Ci_p) * 4 + tm_ * Co_p * 4
        return wbytes + io + work

    fused = tile_h is None
    if fused:
        while fused_fp(tm) > budget and tm > 128:
            tm = max(128, ((tm // 2) // 8) * 8)
        fused = fused_fp(tm) <= budget

    def resident(shape, index_map):
        # Blocks whose index is constant across the grid: single-buffer them
        # (if this build supports it) to free VMEM for bigger row tiles.
        if _HAS_BUFFERED1:
            return pl.BlockSpec(shape, index_map, pipeline_mode=pl.Buffered(1))
        return pl.BlockSpec(shape, index_map)

    if fused:
        grid = (pl.cdiv(M, tm),)
        in_specs = [
            pl.BlockSpec((tm, Ci_p), lambda i: (i, 0)),       # x rows
            resident((Ci_p, H_p), lambda i: (0, 0)),          # w1 (resident)
            resident((1, H_p), lambda i: (0, 0)),             # b1
            resident((H_p, Co_p), lambda i: (0, 0)),          # w2 (resident)
            resident((1, Co_p), lambda i: (0, 0)),            # b2
        ]
        out_specs = pl.BlockSpec((tm, Co_p), lambda i: (i, 0))
        scratch = ()
        dims = ("parallel",)
        kernel = functools.partial(_mlp_kernel_fused, slab=slab_sel)
        needed = fused_fp(tm)
    else:
        # Streaming path re-reads weights once per row tile -> big row tiles.
        tm = M if M <= 1024 else max(tm, 1024)
        th = H_p if tile_h is None else min(_round_up(int(tile_h), 128), H_p)
        while th > 128 and (H_p % th != 0 or htiled_fp(tm, th) > budget):
            th -= 128
        if H_p % th != 0:
            th = H_p
        while htiled_fp(tm, th) > budget and tm > 128:
            tm = max(128, ((tm // 2) // 8) * 8)

        grid = (pl.cdiv(M, tm), H_p // th)
        in_specs = [
            pl.BlockSpec((tm, Ci_p), lambda i, k: (i, 0)),    # x rows
            pl.BlockSpec((Ci_p, th), lambda i, k: (0, k)),    # w1 tile
            pl.BlockSpec((1, th), lambda i, k: (0, k)),       # b1 tile
            pl.BlockSpec((th, Co_p), lambda i, k: (k, 0)),    # w2 tile
            resident((1, Co_p), lambda i, k: (0, 0)),         # b2 (resident)
        ]
        out_specs = pl.BlockSpec((tm, Co_p), lambda i, k: (i, 0))
        scratch = (pltpu.VMEM((tm, Co_p), jnp.float32),)
        dims = ("parallel", "arbitrary")
        kernel = _mlp_kernel_htiled
        needed = htiled_fp(tm, th)

    vmem_limit = int(min(max(int(needed * 1.3), 32 << 20), max(budget, 32 << 20)))

    out = pl.pallas_call(
        kernel,
        out_shape=jax.ShapeDtypeStruct((M, Co_p), out_dtype),
        grid_spec=pltpu.PrefetchScalarGridSpec(
            num_scalar_prefetch=0,
            grid=grid,
            in_specs=in_specs,
            out_specs=out_specs,
            scratch_shapes=scratch),
        compiler_params=pltpu.CompilerParams(
            dimension_semantics=dims,
            vmem_limit_bytes=vmem_limit),
    )(x2, w1p, b1p, w2p, b2p)

    return out[:, :out_features].reshape(B, N, out_features)


# --------------------------------------------------------------------------- #
# Reference + self-test
# --------------------------------------------------------------------------- #
def _reference(x, w1, b1, w2, b2):
    h = jnp.dot(x, w1, precision=jax.lax.Precision.HIGHEST) + b1
    h = 0.5 * h * (1.0 + jax.lax.erf(h / jnp.sqrt(2.0)))
    return jnp.dot(h, w2, precision=jax.lax.Precision.HIGHEST) + b2


if __name__ == "__main__":
    key = jax.random.PRNGKey(0)
    B, N = 2, 8                 # batch=2, seq=8  -> M=16 rows
    in_features = 64
    hidden_features = 256
    out_features = 64           # out_features defaults to in_features

    k0, k1, k2, k3, k4 = jax.random.split(key, 5)
    x = jax.random.normal(k0, (B, N, in_features), dtype=jnp.float32)

    bound1 = 1.0 / math.sqrt(in_features)
    w1 = jax.random.uniform(k1, (in_features, hidden_features),
                            minval=-bound1, maxval=bound1, dtype=jnp.float32)
    b1 = jax.random.uniform(k2, (hidden_features,),
                            minval=-bound1, maxval=bound1, dtype=jnp.float32)
    bound2 = 1.0 / math.sqrt(hidden_features)
    w2 = jax.random.uniform(k3, (hidden_features, out_features),
                            minval=-bound2, maxval=bound2, dtype=jnp.float32)
    b2 = jax.random.uniform(k4, (out_features,),
                            minval=-bound2, maxval=bound2, dtype=jnp.float32)

    ref = _reference(x.reshape(-1, in_features), w1, b1, w2, b2).reshape(
        B, N, out_features)

    # Pad / layout weights ONCE (load-time), not per forward call.
    params, C_out = prepare_mlp_params(w1, b1, w2, b2)

    # 1) default fused path (full hidden dim resident, single-pass slab)
    out = jax.block_until_ready(mlp_forward(x, params, out_features=C_out))
    assert out.shape == (B, N, out_features)
    assert jnp.allclose(out, ref, atol=2e-4, rtol=2e-4), "fused path mismatch"

    # 2) fused path with forced 128-wide hidden slabs (exercises the in-kernel
    #    chunked fori_loop + f32 accumulator)
    out_s = jax.block_until_ready(
        mlp_forward(x, params, out_features=C_out, slab=128))
    assert jnp.allclose(out_s, ref, atol=2e-4, rtol=2e-4), "slab path mismatch"

    # 3) forced hidden-dim streaming path (grid reduction + VMEM accumulator)
    out_t = jax.block_until_ready(
        mlp_forward(x, params, out_features=C_out, tile_h=128))
    assert jnp.allclose(out_t, ref, atol=2e-4, rtol=2e-4), "H-tiled path mismatch"

    print("KERNEL_OK")
</pallas_src>

<mosaic_0001>
module attributes {stable_mosaic.version = 11 : i64} {
  func.func @_k(%arg0: i32, %arg1: memref<8x128xf32, #tpu.memory_space<vmem>>, %arg2: memref<8x128xf32, #tpu.memory_space<vmem>>) attributes {dimension_semantics = [#tpu.dimension_semantics<arbitrary>], iteration_bounds = array<i64: 1>, scalar_prefetch = 0 : i64, scratch_operands = 0 : i64, tpu.core_type = #tpu.core_type<tc>, window_params = [{pipeline_mode = #tpu.pipeline_mode<synchronous>, transform_indices = @transform_0, window_bounds = array<i64: 8, 128>}, {pipeline_mode = #tpu.pipeline_mode<synchronous>, transform_indices = @transform_1, window_bounds = array<i64: 8, 128>}]} {
    %c0 = arith.constant 0 : index
    %c0_0 = arith.constant 0 : index
    %0 = vector.load %arg1[%c0, %c0_0] : memref<8x128xf32, #tpu.memory_space<vmem>>, vector<8x128xf32>
    %cst = arith.constant 1.000000e+00 : f32
    %1 = vector.broadcast %cst : f32 to vector<8x128xf32>
    %2 = arith.addf %0, %1 : vector<8x128xf32>
    %c0_1 = arith.constant 0 : index
    %c0_2 = arith.constant 0 : index
    %3 = vector.load %arg2[%c0_1, %c0_2] : memref<8x128xf32, #tpu.memory_space<vmem>>, vector<8x128xf32>
    tpu.vector_store %arg2[%c0_1, %c0_2], %2 {strides = array<i32>} : memref<8x128xf32, #tpu.memory_space<vmem>>, vector<8x128xf32>,
    return
  }
  func.func @transform_0(%arg0: i32) -> (i32, i32) {
    %c0_i32 = arith.constant 0 : i32
    %c0_i32_0 = arith.constant 0 : i32
    %c0_i32_1 = arith.constant 0 : i32
    return %c0_i32, %c0_i32_0 : i32, i32
  }
  func.func @transform_1(%arg0: i32) -> (i32, i32) {
    %c0_i32 = arith.constant 0 : i32
    %c0_i32_0 = arith.constant 0 : i32
    %c0_i32_1 = arith.constant 0 : i32
    return %c0_i32, %c0_i32_0 : i32, i32
  }
}

module attributes {stable_mosaic.version = 11 : i64} {
  func.func @_mlp_kernel_fused(%arg0: i32, %arg1: memref<16x128xf32, #tpu.memory_space<vmem>>, %arg2: memref<128x256xf32, #tpu.memory_space<vmem>>, %arg3: memref<1x256xf32, #tpu.memory_space<vmem>>, %arg4: memref<256x128xf32, #tpu.memory_space<vmem>>, %arg5: memref<1x128xf32, #tpu.memory_space<vmem>>, %arg6: memref<16x128xf32, #tpu.memory_space<vmem>>) attributes {dimension_semantics = [#tpu.dimension_semantics<parallel>], iteration_bounds = array<i64: 1>, scalar_prefetch = 0 : i64, scratch_operands = 0 : i64, tpu.core_type = #tpu.core_type<tc>, window_params = [{transform_indices = @transform_0, window_bounds = array<i64: 16, 128>}, {pipeline_mode = #tpu.pipeline_mode<synchronous>, transform_indices = @transform_1, window_bounds = array<i64: 128, 256>}, {pipeline_mode = #tpu.pipeline_mode<synchronous>, transform_indices = @transform_2, window_bounds = array<i64: 1, 256>}, {pipeline_mode = #tpu.pipeline_mode<synchronous>, transform_indices = @transform_3, window_bounds = array<i64: 256, 128>}, {pipeline_mode = #tpu.pipeline_mode<synchronous>, transform_indices = @transform_4, window_bounds = array<i64: 1, 128>}, {transform_indices = @transform_5, window_bounds = array<i64: 16, 128>}]} {
    %c0 = arith.constant 0 : index
    %c0_0 = arith.constant 0 : index
    %0 = vector.load %arg1[%c0, %c0_0] : memref<16x128xf32, #tpu.memory_space<vmem>>, vector<16x128xf32>
    %cst = arith.constant 0.000000e+00 : f32
    %1 = vector.broadcast %cst : f32 to vector<16x128xf32>
    %c0_1 = arith.constant 0 : index
    %c0_2 = arith.constant 0 : index
    %2 = vector.load %arg2[%c0_1, %c0_2] : memref<128x256xf32, #tpu.memory_space<vmem>>, vector<128x256xf32>
    %c0_3 = arith.constant 0 : index
    %c0_4 = arith.constant 0 : index
    %3 = vector.load %arg3[%c0_3, %c0_4] : memref<1x256xf32, #tpu.memory_space<vmem>>, vector<1x256xf32>
    %c0_5 = arith.constant 0 : index
    %c0_6 = arith.constant 0 : index
    %4 = vector.load %arg4[%c0_5, %c0_6] : memref<256x128xf32, #tpu.memory_space<vmem>>, vector<256x128xf32>
    %cst_7 = arith.constant dense<0.000000e+00> : vector<16x256xf32>
    %5 = tpu.matmul %0, %2, %cst_7 {dimension_numbers = #tpu.dot_dimension_numbers<[1], [0], [0], [1], [0, 0, 1, 1], [], []>} : vector<16x128xf32>, vector<128x256xf32>, vector<16x256xf32> -> vector<16x256xf32>
    %6 = vector.broadcast %3 : vector<1x256xf32> to vector<16x256xf32>
    %7 = arith.addf %5, %6 : vector<16x256xf32>
    %cst_8 = arith.constant 5.000000e-01 : f32
    %8 = vector.broadcast %cst_8 : f32 to vector<16x256xf32>
    %9 = arith.mulf %8, %7 : vector<16x256xf32>
    %cst_9 = arith.constant 0.707106769 : f32
    %10 = vector.broadcast %cst_9 : f32 to vector<16x256xf32>
    %11 = arith.mulf %7, %10 : vector<16x256xf32>
    %12 = math.erf %11 : vector<16x256xf32>
    %cst_10 = arith.constant 1.000000e+00 : f32
    %13 = vector.broadcast %cst_10 : f32 to vector<16x256xf32>
    %14 = arith.addf %13, %12 : vector<16x256xf32>
    %15 = arith.mulf %9, %14 : vector<16x256xf32>
    %cst_11 = arith.constant dense<0.000000e+00> : vector<16x128xf32>
    %16 = tpu.matmul %15, %4, %cst_11 {dimension_numbers = #tpu.dot_dimension_numbers<[1], [0], [0], [1], [0, 0, 1, 1], [], []>} : vector<16x256xf32>, vector<256x128xf32>, vector<16x128xf32> -> vector<16x128xf32>
    %17 = arith.addf %1, %16 : vector<16x128xf32>
    %c0_12 = arith.constant 0 : index
    %c0_13 = arith.constant 0 : index
    %18 = vector.load %arg5[%c0_12, %c0_13] : memref<1x128xf32, #tpu.memory_space<vmem>>, vector<1x128xf32>
    %19 = vector.broadcast %18 : vector<1x128xf32> to vector<16x128xf32>
    %20 = arith.addf %17, %19 : vector<16x128xf32>
    %c0_14 = arith.constant 0 : index
    %c0_15 = arith.constant 0 : index
    %21 = vector.load %arg6[%c0_14, %c0_15] : memref<16x128xf32, #tpu.memory_space<vmem>>, vector<16x128xf32>
    tpu.vector_store %arg6[%c0_14, %c0_15], %20 {strides = array<i32>} : memref<16x128xf32, #tpu.memory_space<vmem>>, vector<16x128xf32>,
    return
  }
  func.func @transform_0(%arg0: i32) -> (i32, i32) {
    %c0_i32 = arith.constant 0 : i32
    %c0_i32_0 = arith.constant 0 : i32
    return %arg0, %c0_i32 : i32, i32
  }
  func.func @transform_1(%arg0: i32) -> (i32, i32) {
    %c0_i32 = arith.constant 0 : i32
    %c0_i32_0 = arith.constant 0 : i32
    %c0_i32_1 = arith.constant 0 : i32
    return %c0_i32, %c0_i32_0 : i32, i32
  }
  func.func @transform_2(%arg0: i32) -> (i32, i32) {
    %c0_i32 = arith.constant 0 : i32
    %c0_i32_0 = arith.constant 0 : i32
    %c0_i32_1 = arith.constant 0 : i32
    return %c0_i32, %c0_i32_0 : i32, i32
  }
  func.func @transform_3(%arg0: i32) -> (i32, i32) {
    %c0_i32 = arith.constant 0 : i32
    %c0_i32_0 = arith.constant 0 : i32
    %c0_i32_1 = arith.constant 0 : i32
    return %c0_i32, %c0_i32_0 : i32, i32
  }
  func.func @transform_4(%arg0: i32) -> (i32, i32) {
    %c0_i32 = arith.constant 0 : i32
    %c0_i32_0 = arith.constant 0 : i32
    %c0_i32_1 = arith.constant 0 : i32
    return %c0_i32, %c0_i32_0 : i32, i32
  }
  func.func @transform_5(%arg0: i32) -> (i32, i32) {
    %c0_i32 = arith.constant 0 : i32
    %c0_i32_0 = arith.constant 0 : i32
    return %arg0, %c0_i32 : i32, i32
  }
}

</mosaic_0001>

<llo_original>
// kernel: tpu_custom_call.1
$region0: #{tpu_custom_call.1}
  #allocation0 [shape = 'u32[]', space=smem, size = 0x4, offset = 0x4, fixed_abs, tag = 'smem constant byte address 0x4 - core index']
  #allocation1 [shape = 'u32[144,128]{1,0:T(1,128)}', space=vmem, size = 0x12000, scoped, tag = 'internal scratch']
  %s0 = inlined_call_operand.hbm [shape: f32[8,128], index: 0, kind: input, shape index: {}]
  %s1 = inlined_call_operand.hbm [shape: f32[8,128], index: 1, kind: output, shape index: {}]
  %s2 = sld [smem:[#allocation0]]
  $region18: #{tpu_custom_call.1} parent=0
    _
  %s4 = ssub.s32 1, %s2
  %s5 = scalar_select 0, %s4, %s2
  $region1: #{tpu_custom_call.1} parent=0
    #allocation2 [shape = 'u8[4096]{0}', space=vmem, size = 0x1000, scoped, tag = 'input window, operand 0, single buffered']
    #allocation3 [shape = 's32[1]{0}', space=sflag, size = 0x4, scoped, tag = 'scoped memory for tpu_custom_call.1']
    #allocation4 [shape = 's32[1]{0}', space=sflag, size = 0x4, scoped, tag = 'scoped memory for tpu_custom_call.1']
    #allocation5 [shape = 'u8[4096]{0}', space=vmem, size = 0x1000, scoped, tag = 'output window, operand 0, single buffered']
    %6 = vsyncpa [#allocation3], 0
    %7 = vsyncpa [#allocation4], 0
    // Predicated region
    $region2: #{tpu_custom_call.1} parent=1 // pred_check
      _
    $region3: #{tpu_custom_call.1} parent=1 // pred_check_branch
      %9 = sbr.rel (0) target = $region5
    $region4: #{tpu_custom_call.1} parent=1 // pred_region
      %s11 = ssub.s32 128, 128
      %12 = vsyncadd [#allocation3], %s11
      %s14 = sshll.u32 [#allocation2], 4
      %s15 = int_to_ptr.vmem [resolvable:$true] %s14
      %17 = dma.hbm_to_vmem [thread:$0]  %s0, 128, %s15, [#allocation3]
    $region5: #{tpu_custom_call.1} parent=1 // pred_fallthru
      _
    // Predicated region
    $region6: #{tpu_custom_call.1} parent=1 // pred_check
      _
    $region7: #{tpu_custom_call.1} parent=1 // pred_check_branch
      %19 = sbr.rel (0) target = $region9
    $region8: #{tpu_custom_call.1} parent=1 // pred_region
      %20 = dma.done [#allocation3], 128
    $region9: #{tpu_custom_call.1} parent=1 // pred_fallthru
      _
    %v21 = vld [vmem:[#allocation2] sm:$0xff]
    %v22 = vadd.f32 %v21, 1.0
    %23 = vst [vmem:[#allocation5] sm:$0xff] %v22
    // Predicated region
    $region10: #{tpu_custom_call.1} parent=1 // pred_check
      _
    $region11: #{tpu_custom_call.1} parent=1 // pred_check_branch
      %25 = sbr.rel (0) target = $region13
    $region12: #{tpu_custom_call.1} parent=1 // pred_region
      %s27 = ssub.s32 128, 128
      %28 = vsyncadd [#allocation4], %s27
      %s30 = sshll.u32 [#allocation5], 4
      %s31 = int_to_ptr.vmem [resolvable:$true] %s30
      %33 = dma.vmem_to_hbm [thread:$0]  %s31, 128, %s1, [#allocation4]
    $region13: #{tpu_custom_call.1} parent=1 // pred_fallthru
      _
    // Predicated region
    $region14: #{tpu_custom_call.1} parent=1 // pred_check
      _
    $region15: #{tpu_custom_call.1} parent=1 // pred_check_branch
      %35 = sbr.rel (0) target = $region17
    $region16: #{tpu_custom_call.1} parent=1 // pred_region
      %36 = dma.done [#allocation4], 128
    $region17: #{tpu_custom_call.1} parent=1 // pred_fallthru
      _
    %37 = vsyncpa [#allocation3], 1
    %38 = vsyncpa [#allocation4], 1

// kernel: mlp_forward.1
$region0: #{mlp_forward.1}
  #allocation0 [shape = 'u32[]', space=smem, size = 0x4, offset = 0x4, fixed_abs, tag = 'smem constant byte address 0x4 - core index']
  #allocation1 [shape = 'u32[144,128]{1,0:T(1,128)}', space=vmem, size = 0x12000, scoped, tag = 'internal scratch']
  %s0 = inlined_call_operand.vmem [shape: f32[16,128], index: 0, kind: input, shape index: {}]
  %s1 = inlined_call_operand.hbm [shape: f32[128,256], index: 1, kind: input, shape index: {}]
  %s2 = inlined_call_operand.vmem [shape: f32[1,256], index: 2, kind: input, shape index: {}]
  %s3 = inlined_call_operand.hbm [shape: f32[256,128], index: 3, kind: input, shape index: {}]
  %s4 = inlined_call_operand.vmem [shape: f32[1,128], index: 4, kind: input, shape index: {}]
  %s5 = inlined_call_operand.vmem [shape: f32[16,128], index: 5, kind: output, shape index: {}]
  %s6 = sld [smem:[#allocation0]]
  $region38: #{mlp_forward.1} parent=0
    _
  %s8 = ssub.s32 1, %s6
  %s9 = scalar_select 0, %s8, %s6
  $region1: #{mlp_forward.1} parent=0
    #allocation2 [shape = 'u8[131072]{0}', space=vmem, size = 0x20000, scoped, tag = 'input window, operand 1, single buffered']
    #allocation3 [shape = 's32[1]{0}', space=sflag, size = 0x4, scoped, tag = 'scoped memory for mlp_forward.1']
    #allocation4 [shape = 'u8[131072]{0}', space=vmem, size = 0x20000, scoped, tag = 'input window, operand 3, single buffered']
    #allocation5 [shape = 's32[1]{0}', space=sflag, size = 0x4, scoped, tag = 'scoped memory for mlp_forward.1']
    %10 = vsyncpa [#allocation3], 0
    %11 = vsyncpa [#allocation5], 0
    // Predicated region
    $region2: #{mlp_forward.1} parent=1 // pred_check
      _
    $region3: #{mlp_forward.1} parent=1 // pred_check_branch
      %13 = sbr.rel (0) target = $region5
    $region4: #{mlp_forward.1} parent=1 // pred_region
      _
    $region5: #{mlp_forward.1} parent=1 // pred_fallthru
      _
    // Predicated region
    $region6: #{mlp_forward.1} parent=1 // pred_check
      _
    $region7: #{mlp_forward.1} parent=1 // pred_check_branch
      %15 = sbr.rel (0) target = $region9
    $region8: #{mlp_forward.1} parent=1 // pred_region
      %s17 = ssub.s32 4096, 4096
      %18 = vsyncadd [#allocation3], %s17
      %s19 = sshll.u32 [#allocation2], 4
      %s20 = int_to_ptr.vmem [resolvable:$true] %s19
      %25 = dma.hbm_to_vmem [thread:$0]  %s1, 4096, %s20, [#allocation3], 256, 256, 16
    $region9: #{mlp_forward.1} parent=1 // pred_fallthru
      _
    // Predicated region
    $region10: #{mlp_forward.1} parent=1 // pred_check
      _
    $region11: #{mlp_forward.1} parent=1 // pred_check_branch
      %27 = sbr.rel (0) target = $region13
    $region12: #{mlp_forward.1} parent=1 // pred_region
      _
    $region13: #{mlp_forward.1} parent=1 // pred_fallthru
      _
    // Predicated region
    $region14: #{mlp_forward.1} parent=1 // pred_check
      _
    $region15: #{mlp_forward.1} parent=1 // pred_check_branch
      %29 = sbr.rel (0) target = $region17
    $region16: #{mlp_forward.1} parent=1 // pred_region
      %s31 = ssub.s32 4096, 4096
      %32 = vsyncadd [#allocation5], %s31
      %s33 = sshll.u32 [#allocation4], 4
      %s34 = int_to_ptr.vmem [resolvable:$true] %s33
      %39 = dma.hbm_to_vmem [thread:$0]  %s3, 4096, %s34, [#allocation5], 128, 128, 8
    $region17: #{mlp_forward.1} parent=1 // pred_fallthru
      _
    // Predicated region
    $region18: #{mlp_forward.1} parent=1 // pred_check
      _
    $region19: #{mlp_forward.1} parent=1 // pred_check_branch
      %41 = sbr.rel (0) target = $region21
    $region20: #{mlp_forward.1} parent=1 // pred_region
      _
    $region21: #{mlp_forward.1} parent=1 // pred_fallthru
      _
    // Predicated region
    $region22: #{mlp_forward.1} parent=1 // pred_check
      _
    $region23: #{mlp_forward.1} parent=1 // pred_check_branch
      %43 = sbr.rel (0) target = $region25
    $region24: #{mlp_forward.1} parent=1 // pred_region
      %44 = dma.done [#allocation3], 4096
    $region25: #{mlp_forward.1} parent=1 // pred_fallthru
      _
    // Predicated region
    $region26: #{mlp_forward.1} parent=1 // pred_check
      _
    $region27: #{mlp_forward.1} parent=1 // pred_check_branch
      %46 = sbr.rel (0) target = $region29
    $region28: #{mlp_forward.1} parent=1 // pred_region
      %47 = dma.done [#allocation5], 4096
    $region29: #{mlp_forward.1} parent=1 // pred_fallthru
      _
    %v48 = vld [vmem:[%s0] sm:$0xff]
    %v49 = vld [vmem:[%s0 + $0x8] sm:$0xff]
    %v50 = vld [vmem:[#allocation2] sm:$0xff]
    %v51 = vld [vmem:[#allocation2 + $0x8] sm:$0xff]
    %v52 = vld [vmem:[#allocation2 + $0x10] sm:$0xff]
    %v53 = vld [vmem:[#allocation2 + $0x18] sm:$0xff]
    %v54 = vld [vmem:[#allocation2 + $0x20] sm:$0xff]
    %v55 = vld [vmem:[#allocation2 + $0x28] sm:$0xff]
    %v56 = vld [vmem:[#allocation2 + $0x30] sm:$0xff]
    %v57 = vld [vmem:[#allocation2 + $0x38] sm:$0xff]
    %v58 = vld [vmem:[#allocation2 + $0x40] sm:$0xff]
    %v59 = vld [vmem:[#allocation2 + $0x48] sm:$0xff]
    %v60 = vld [vmem:[#allocation2 + $0x50] sm:$0xff]
    %v61 = vld [vmem:[#allocation2 + $0x58] sm:$0xff]
    %v62 = vld [vmem:[#allocation2 + $0x60] sm:$0xff]
    %v63 = vld [vmem:[#allocation2 + $0x68] sm:$0xff]
    %v64 = vld [vmem:[#allocation2 + $0x70] sm:$0xff]
    %v65 = vld [vmem:[#allocation2 + $0x78] sm:$0xff]
    %v66 = vld [vmem:[#allocation2 + $0x80] sm:$0xff]
    %v67 = vld [vmem:[#allocation2 + $0x88] sm:$0xff]
    %v68 = vld [vmem:[#allocation2 + $0x90] sm:$0xff]
    %v69 = vld [vmem:[#allocation2 + $0x98] sm:$0xff]
    %v70 = vld [vmem:[#allocation2 + $0xa0] sm:$0xff]
    %v71 = vld [vmem:[#allocation2 + $0xa8] sm:$0xff]
    %v72 = vld [vmem:[#allocation2 + $0xb0] sm:$0xff]
    %v73 = vld [vmem:[#allocation2 + $0xb8] sm:$0xff]
    %v74 = vld [vmem:[#allocation2 + $0xc0] sm:$0xff]
    %v75 = vld [vmem:[#allocation2 + $0xc8] sm:$0xff]
    %v76 = vld [vmem:[#allocation2 + $0xd0] sm:$0xff]
    %v77 = vld [vmem:[#allocation2 + $0xd8] sm:$0xff]
    %v78 = vld [vmem:[#allocation2 + $0xe0] sm:$0xff]
    %v79 = vld [vmem:[#allocation2 + $0xe8] sm:$0xff]
    %v80 = vld [vmem:[#allocation2 + $0xf0] sm:$0xff]
    %v81 = vld [vmem:[#allocation2 + $0xf8] sm:$0xff]
    %v82 = vld [vmem:[%s2] sm:$0x3]
    %v83 = vld [vmem:[#allocation4] sm:$0xff]
    %v84 = vld [vmem:[#allocation4 + $0x8] sm:$0xff]
    %v85 = vld [vmem:[#allocation4 + $0x10] sm:$0xff]
    %v86 = vld [vmem:[#allocation4 + $0x18] sm:$0xff]
    %v87 = vld [vmem:[#allocation4 + $0x20] sm:$0xff]
    %v88 = vld [vmem:[#allocation4 + $0x28] sm:$0xff]
    %v89 = vld [vmem:[#allocation4 + $0x30] sm:$0xff]
    %v90 = vld [vmem:[#allocation4 + $0x38] sm:$0xff]
    %v91 = vld [vmem:[#allocation4 + $0x40] sm:$0xff]
    %v92 = vld [vmem:[#allocation4 + $0x48] sm:$0xff]
    %v93 = vld [vmem:[#allocation4 + $0x50] sm:$0xff]
    %v94 = vld [vmem:[#allocation4 + $0x58] sm:$0xff]
    %v95 = vld [vmem:[#allocation4 + $0x60] sm:$0xff]
    %v96 = vld [vmem:[#allocation4 + $0x68] sm:$0xff]
    %v97 = vld [vmem:[#allocation4 + $0x70] sm:$0xff]
    %v98 = vld [vmem:[#allocation4 + $0x78] sm:$0xff]
    %v99 = vld [vmem:[#allocation4 + $0x80] sm:$0xff]
    %v100 = vld [vmem:[#allocation4 + $0x88] sm:$0xff]
    %v101 = vld [vmem:[#allocation4 + $0x90] sm:$0xff]
    %v102 = vld [vmem:[#allocation4 + $0x98] sm:$0xff]
    %v103 = vld [vmem:[#allocation4 + $0xa0] sm:$0xff]
    %v104 = vld [vmem:[#allocation4 + $0xa8] sm:$0xff]
    %v105 = vld [vmem:[#allocation4 + $0xb0] sm:$0xff]
    %v106 = vld [vmem:[#allocation4 + $0xb8] sm:$0xff]
    %v107 = vld [vmem:[#allocation4 + $0xc0] sm:$0xff]
    %v108 = vld [vmem:[#allocation4 + $0xc8] sm:$0xff]
    %v109 = vld [vmem:[#allocation4 + $0xd0] sm:$0xff]
    %v110 = vld [vmem:[#allocation4 + $0xd8] sm:$0xff]
    %v111 = vld [vmem:[#allocation4 + $0xe0] sm:$0xff]
    %v112 = vld [vmem:[#allocation4 + $0xe8] sm:$0xff]
    %v113 = vld [vmem:[#allocation4 + $0xf0] sm:$0xff]
    %v114 = vld [vmem:[#allocation4 + $0xf8] sm:$0xff]
    %v116 = vlaneseq
    %v117 = vshrl.u32 %v116, 7
    %v118 = vsub.s32 0, %v117
    %v119 = vrot.slane %v82, %v118
    %v120 = vlaneseq
    %v121 = vshrl.u32 %v120, 7
    %v122 = vsub.s32 1, %v121
    %v123 = vrot.slane %v82, %v122
    %126 = vmatprep.subr.mxu0 %v51
    %127 = vmatpush1.msra.mxu0 %v50
    %128 = vmatprep.subr.mxu0 %v53
    %129 = vmatpush1.msra.mxu0 %v52
    %130 = vmatprep.subr.mxu0 %v55
    %131 = vmatpush1.msra.mxu0 %v54
    %132 = vmatprep.subr.mxu0 %v57
    %133 = vmatpush1.msra.mxu0 %v56
    %134 = vmatprep.subr.mxu0 %v59
    %135 = vmatpush1.msra.mxu0 %v58
    %136 = vmatprep.subr.mxu0 %v61
    %137 = vmatpush1.msra.mxu0 %v60
    %138 = vmatprep.subr.mxu0 %v63
    %139 = vmatpush1.msra.mxu0 %v62
    %140 = vmatprep.subr.mxu0 %v65
    %141 = vmatpush1.msra.mxu0 %v64
    %142 = vmatprep.subr.mxu0 %v67
    %143 = vmatpush1.msra.mxu0 %v66
    %144 = vmatprep.subr.mxu0 %v69
    %145 = vmatpush1.msra.mxu0 %v68
    %146 = vmatprep.subr.mxu0 %v71
    %147 = vmatpush1.msra.mxu0 %v70
    %148 = vmatprep.subr.mxu0 %v73
    %149 = vmatpush1.msra.mxu0 %v72
    %150 = vmatprep.subr.mxu0 %v75
    %151 = vmatpush1.msra.mxu0 %v74
    %152 = vmatprep.subr.mxu0 %v77
    %153 = vmatpush1.msra.mxu0 %v76
    %154 = vmatprep.subr.mxu0 %v79
    %155 = vmatpush1.msra.mxu0 %v78
    %156 = vmatprep.subr.mxu0 %v81
    %157 = vmatpush1.msra.mxu0 %v80
    %158 = vmatprep.subr.mxu0 0.0
    %159 = vmatpush1.msra.mxu0 0.0
    %160 = vmatprep.subr.mxu0 0.0
    %161 = vmatpush1.msra.mxu0 0.0
    %162 = vmatprep.subr.mxu0 0.0
    %163 = vmatpush1.msra.mxu0 0.0
    %164 = vmatprep.subr.mxu0 0.0
    %165 = vmatpush1.msra.mxu0 0.0
    %166 = vmatprep.subr.mxu0 0.0
    %167 = vmatpush1.msra.mxu0 0.0
    %168 = vmatprep.subr.mxu0 0.0
    %169 = vmatpush1.msra.mxu0 0.0
    %170 = vmatprep.subr.mxu0 0.0
    %171 = vmatpush1.msra.mxu0 0.0
    %172 = vmatprep.subr.mxu0 0.0
    %173 = vmatpush1.msra.mxu0 0.0
    %174 = vmatprep.subr.mxu0 0.0
    %175 = vmatpush1.msra.mxu0 0.0
    %176 = vmatprep.subr.mxu0 0.0
    %177 = vmatpush1.msra.mxu0 0.0
    %178 = vmatprep.subr.mxu0 0.0
    %179 = vmatpush1.msra.mxu0 0.0
    %180 = vmatprep.subr.mxu0 0.0
    %181 = vmatpush1.msra.mxu0 0.0
    %182 = vmatprep.subr.mxu0 0.0
    %183 = vmatpush1.msra.mxu0 0.0
    %184 = vmatprep.subr.mxu0 0.0
    %185 = vmatpush1.msra.mxu0 0.0
    %186 = vmatprep.subr.mxu0 0.0
    %187 = vmatpush1.msra.mxu0 0.0
    %188 = vmatprep.subr.mxu0 0.0
    %189 = vmatpush1.msra.mxu0 0.0
    %190 = vmatprep.mubr.f32.mxu0 0.0
    %191 = vmatmul.mubr.f32.gmra.mrb[0].mxu0 %v48
    %v192 = vpop.f32.mrb[0].mxu0
    %v193 = vadd.f32 %v119, %v192
    %v194 = vpop.f32.mrb[0].mxu0
    %v195 = vadd.f32 %v123, %v194
    %196 = vmatprep.mubr.f32.mxu0 0.0
    %197 = vmatmul.mubr.f32.gmra.mrb[0].mxu0 %v49
    %v198 = vpop.f32.mrb[0].mxu0
    %v199 = vadd.f32 %v119, %v198
    %v200 = vpop.f32.mrb[0].mxu0
    %v201 = vadd.f32 %v123, %v200
    %202 = vdwg.mxu0
    %v203 = vmul.f32 %v193, 0.5
    %v204 = vmul.f32 %v195, 0.5
    %v205 = vmul.f32 %v199, 0.5
    %v206 = vmul.f32 %v201, 0.5
    %v207 = vmul.f32 %v193, 0.70710677
    %v208 = vmul.f32 %v195, 0.70710677
    %v209 = vmul.f32 %v199, 0.70710677
    %v210 = vmul.f32 %v201, 0.70710677
    %v211 = verf.f32.pop %v207
    %v212 = verf.f32.pop %v208
    %v213 = verf.f32.pop %v209
    %v214 = verf.f32.pop %v210
    %v215 = vadd.f32 %v211, 1.0
    %v216 = vadd.f32 %v212, 1.0
    %v217 = vadd.f32 %v213, 1.0
    %v218 = vadd.f32 %v214, 1.0
    %v219 = vmul.f32 %v203, %v215
    %v220 = vmul.f32 %v204, %v216
    %v221 = vmul.f32 %v205, %v217
    %v222 = vmul.f32 %v206, %v218
    %v223 = vld [vmem:[%s4] sm:$0x1]
    %v225 = vlaneseq
    %v226 = vshrl.u32 %v225, 7
    %v227 = vsub.s32 0, %v226
    %v228 = vrot.slane %v223, %v227
    %230 = vmatprep.subr.mxu0 0.0
    %231 = vmatpush1.msra.mxu0 %v83
    %232 = vmatprep.subr.mxu0 0.0
    %233 = vmatpush1.msra.mxu0 %v84
    %234 = vmatprep.subr.mxu0 0.0
    %235 = vmatpush1.msra.mxu0 %v85
    %236 = vmatprep.subr.mxu0 0.0
    %237 = vmatpush1.msra.mxu0 %v86
    %238 = vmatprep.subr.mxu0 0.0
    %239 = vmatpush1.msra.mxu0 %v87
    %240 = vmatprep.subr.mxu0 0.0
    %241 = vmatpush1.msra.mxu0 %v88
    %242 = vmatprep.subr.mxu0 0.0
    %243 = vmatpush1.msra.mxu0 %v89
    %244 = vmatprep.subr.mxu0 0.0
    %245 = vmatpush1.msra.mxu0 %v90
    %246 = vmatprep.subr.mxu0 0.0
    %247 = vmatpush1.msra.mxu0 %v91
    %248 = vmatprep.subr.mxu0 0.0
    %249 = vmatpush1.msra.mxu0 %v92
    %250 = vmatprep.subr.mxu0 0.0
    %251 = vmatpush1.msra.mxu0 %v93
    %252 = vmatprep.subr.mxu0 0.0
    %253 = vmatpush1.msra.mxu0 %v94
    %254 = vmatprep.subr.mxu0 0.0
    %255 = vmatpush1.msra.mxu0 %v95
    %256 = vmatprep.subr.mxu0 0.0
    %257 = vmatpush1.msra.mxu0 %v96
    %258 = vmatprep.subr.mxu0 0.0
    %259 = vmatpush1.msra.mxu0 %v97
    %260 = vmatprep.subr.mxu0 0.0
    %261 = vmatpush1.msra.mxu0 %v98
    %262 = vmatprep.subr.mxu0 0.0
    %263 = vmatpush1.msra.mxu0 %v99
    %264 = vmatprep.subr.mxu0 0.0
    %265 = vmatpush1.msra.mxu0 %v100
    %266 = vmatprep.subr.mxu0 0.0
    %267 = vmatpush1.msra.mxu0 %v101
    %268 = vmatprep.subr.mxu0 0.0
    %269 = vmatpush1.msra.mxu0 %v102
    %270 = vmatprep.subr.mxu0 0.0
    %271 = vmatpush1.msra.mxu0 %v103
    %272 = vmatprep.subr.mxu0 0.0
    %273 = vmatpush1.msra.mxu0 %v104
    %274 = vmatprep.subr.mxu0 0.0
    %275 = vmatpush1.msra.mxu0 %v105
    %276 = vmatprep.subr.mxu0 0.0
    %277 = vmatpush1.msra.mxu0 %v106
    %278 = vmatprep.subr.mxu0 0.0
    %279 = vmatpush1.msra.mxu0 %v107
    %280 = vmatprep.subr.mxu0 0.0
    %281 = vmatpush1.msra.mxu0 %v108
    %282 = vmatprep.subr.mxu0 0.0
    %283 = vmatpush1.msra.mxu0 %v109
    %284 = vmatprep.subr.mxu0 0.0
    %285 = vmatpush1.msra.mxu0 %v110
    %286 = vmatprep.subr.mxu0 0.0
    %287 = vmatpush1.msra.mxu0 %v111
    %288 = vmatprep.subr.mxu0 0.0
    %289 = vmatpush1.msra.mxu0 %v112
    %290 = vmatprep.subr.mxu0 0.0
    %291 = vmatpush1.msra.mxu0 %v113
    %292 = vmatprep.subr.mxu0 0.0
    %293 = vmatpush1.msra.mxu0 %v114
    %294 = vmatprep.mubr.f32.mxu0 %v220
    %295 = vmatmul.mubr.f32.gmra.mrb[0].mxu0 %v219
    %v296 = vpop.f32.mrb[0].mxu0
    %v297 = vadd.f32 %v228, %v296
    %v298 = vpop.f32.mrb[0].mxu0
    %299 = vmatprep.mubr.f32.mxu0 %v222
    %300 = vmatmul.mubr.f32.gmra.mrb[0].mxu0 %v221
    %v301 = vpop.f32.mrb[0].mxu0
    %v302 = vadd.f32 %v228, %v301
    %v303 = vpop.f32.mrb[0].mxu0
    %304 = vdwg.mxu0
    %305 = vst [vmem:[%s5] sm:$0xff] %v297
    %306 = vst [vmem:[%s5 + $0x8] sm:$0xff] %v302
    // Predicated region
    $region30: #{mlp_forward.1} parent=1 // pred_check
      _
    $region31: #{mlp_forward.1} parent=1 // pred_check_branch
      %308 = sbr.rel (0) target = $region33
    $region32: #{mlp_forward.1} parent=1 // pred_region
      _
    $region33: #{mlp_forward.1} parent=1 // pred_fallthru
      _
    // Predicated region
    $region34: #{mlp_forward.1} parent=1 // pred_check
      _
    $region35: #{mlp_forward.1} parent=1 // pred_check_branch
      %310 = sbr.rel (0) target = $region37
    $region36: #{mlp_forward.1} parent=1 // pred_region
      _
    $region37: #{mlp_forward.1} parent=1 // pred_fallthru
      _
    %311 = vsyncpa [#allocation3], 1
    %312 = vsyncpa [#allocation5], 1

</llo_original>
